<compile_context>
chip_gen: v7x
topology: tpu7x:2x2x1
jax: 0.10.0
libtpu: 0.0.40
codegen_flags: <defaults>
</compile_context>

<pallas_src>
import math

import jax
import jax.numpy as jnp
from jax.experimental import pallas as pl
from jax.experimental.pallas import tpu as pltpu


def _layer_scale_kernel(x_ref, g_ref, o_ref):
    # x_ref: (tm, tn) tile of flattened tokens; g_ref: (1, tn) gamma row.
    # (1, tn) broadcasts over the row axis of the tile.
    o_ref[...] = x_ref[...] * g_ref[...]


def _device_budgets(block_bytes):
    """Generation-aware (block_bytes, vmem_limit_bytes)."""
    try:
        vmem_cap = int(pltpu.get_tpu_info().vmem_capacity_bytes)
    except Exception:  # fall back to the smallest generation (v7x: 64 MiB) — safe everywhere
        vmem_cap = 64 * 1024 * 1024
    if block_bytes is None:
        block_bytes = vmem_cap // 8          # 8 MiB on v7x, 16 MiB on v5e/v6e
    block_bytes = max(512 * 1024, min(block_bytes, vmem_cap // 8))
    # ~4x block_bytes live at once (double-buffered x-in + x-out), plus margin.
    vmem_limit = min(vmem_cap * 3 // 4, 4 * block_bytes + (16 << 20))
    return block_bytes, int(vmem_limit)


def _lane_util(width):
    return width / float(((width + 127) // 128) * 128)


def _pick_fold(M, D, max_lanes=2048):
    """Number of rows folded into the lane axis (k must divide M: reshape stays copy-free)."""
    if M <= 1:
        return 1
    if D % 128 == 0:
        k = 1
        while k * D < 512 and M % (2 * k) == 0:
            k *= 2
        return k
    k_base = 128 // math.gcd(D, 128)          # smallest k with (k*D) % 128 == 0
    if M % k_base == 0:
        k = k_base
        while k * D < 512 and M % (2 * k) == 0:
            k *= 2
        return k
    # M not divisible by the exact alignment factor: fold the best divisor of M,
    # copy-free, to maximize lane utilization of the last vreg (instead of padding
    # or splitting, which would add full HBM passes to a DMA-bound op).
    best_k, best_u = 1, _lane_util(D)
    kmax = min(M, max(1, max_lanes // D))
    for cand in range(2, kmax + 1):
        if M % cand:
            continue
        u = _lane_util(cand * D)
        if u > best_u + 1e-9 or (abs(u - best_u) <= 1e-9 and cand > best_k):
            best_k, best_u = cand, u
    return best_k


def _pick_row_tile(Mw, row_align, tm_budget, min_tiles):
    """Row-tile size: byte-budgeted, >= min_tiles grid steps, prefers even division of Mw."""
    tm = max(row_align, (tm_budget // row_align) * row_align)
    if min_tiles > 1 and Mw >= min_tiles * row_align:
        cap = max(row_align, (Mw // min_tiles // row_align) * row_align)
        tm = min(tm, cap)
    tm = min(tm, Mw)
    if tm <= 0:
        return Mw
    if 0 < tm < Mw and Mw % tm != 0:
        # Nudge tm down (>= 3/4 of the budgeted size) to divide Mw evenly so the
        # last row tile is not a masked remainder.
        t = tm
        floor_t = max(row_align, (tm * 3) // 4)
        while t >= floor_t:
            if Mw % t == 0:
                return t
            t -= row_align
    return tm


def layer_scale(x: jax.Array, gamma: jax.Array, *,
                block_bytes: int | None = None,
                min_pallas_bytes: int = 1 << 20,
                donate_x: bool = False) -> jax.Array:
    """Computes x * gamma with gamma broadcast along the last axis (LayerScale.forward)."""
    orig_shape = x.shape
    D = orig_shape[-1]
    assert gamma.shape == (D,), f"gamma must have shape ({D},), got {gamma.shape}"

    # Result dtype == x.dtype (see dtype note at top of file).
    g = gamma.astype(x.dtype)

    itemsize = jnp.dtype(x.dtype).itemsize
    total_bytes = x.size * itemsize
    if total_bytes < min_pallas_bytes:
        # Tiny tensors: pallas_call launch overhead dominates; XLA's fused multiply
        # is already at roofline.
        return x * g

    x2 = x.reshape(-1, D)                     # contiguous reshape: free
    M = x2.shape[0]
    row_align = max(8, 32 // itemsize)        # sublane multiple: 8 f32 / 16 bf16 / 32 i8

    block_bytes, vmem_limit = _device_budgets(block_bytes)

    # ---- Lane-dense repack: fold k consecutive rows into the lane axis.
    k = _pick_fold(M, D)
    Mw, Dw = M // k, D * k
    xw = x2.reshape(Mw, Dw)
    gw = jnp.tile(g, k).reshape(1, Dw)

    # ---- Lane tile: keep the whole lane axis unless even one sublane-group of rows
    # blows the block budget; then tile with a 128-multiple (masked tail only) so the
    # per-block VMEM footprint stays bounded (matters on v7x's 64 MiB VMEM).
    if row_align * Dw * itemsize <= block_bytes:
        tn = Dw
    else:
        tn = max(128, ((block_bytes // (row_align * itemsize)) // 128) * 128)
        tn = min(tn, Dw)
    n_lane_tiles = pl.cdiv(Dw, tn)

    # ---- Row tile: byte-budgeted, but guarantee >= 4 total grid steps when Mw allows
    # so the software pipeline fills and both v7x TensorCores get >= 2 steps each.
    min_row_tiles = -(-4 // n_lane_tiles)
    tm_budget = max(1, block_bytes // (tn * itemsize))
    tm = _pick_row_tile(Mw, row_align, tm_budget, min_row_tiles)

    grid = (pl.cdiv(Mw, tm), n_lane_tiles)

    call_kwargs = {}
    if donate_x:
        call_kwargs["input_output_aliases"] = {0: 0}

    out = pl.pallas_call(
        _layer_scale_kernel,
        out_shape=jax.ShapeDtypeStruct((Mw, Dw), x.dtype),
        grid_spec=pltpu.PrefetchScalarGridSpec(
            num_scalar_prefetch=0,
            grid=grid,
            in_specs=[
                pl.BlockSpec((tm, tn), lambda i, j: (i, j)),
                pl.BlockSpec((1, tn), lambda i, j: (0, j)),
            ],
            out_specs=pl.BlockSpec((tm, tn), lambda i, j: (i, j)),
        ),
        compiler_params=pltpu.CompilerParams(
            dimension_semantics=("parallel", "parallel"),
            vmem_limit_bytes=vmem_limit,
        ),
        **call_kwargs,
    )(xw, gw)

    return out.reshape(orig_shape)


if __name__ == "__main__":
    key = jax.random.PRNGKey(0)

    # Shapes consistent with LayerScale inside a ViT block: (batch, seq, hidden).
    B, N, D = 2, 8, 32
    x = jax.random.normal(key, (B, N, D), dtype=jnp.float32)

    # Deterministic parameter init, matching nn.Parameter(init_values * ones(dim)).
    init_values = 1e-5
    gamma = init_values * jnp.ones((D,), dtype=jnp.float32)
    ref = x * gamma

    # 1) Public API: this tiny input takes the small-tensor fast path.
    y = jax.block_until_ready(layer_scale(x, gamma))
    assert y.shape == x.shape and y.dtype == x.dtype
    assert jnp.allclose(y, ref, atol=0, rtol=0)

    # 2) Force the Pallas path on the same shape (perfect lane-dense repack, D=32).
    y2 = jax.block_until_ready(layer_scale(x, gamma, min_pallas_bytes=0))
    assert jnp.allclose(y2, ref, atol=0, rtol=0)

    # 3) Multi-step grid (row tiling + pipeline fill), D a multiple of 128.
    x3 = jax.random.normal(jax.random.PRNGKey(0), (8, 256, 128), dtype=jnp.float32)
    g3 = 1e-5 * jnp.ones((128,), dtype=jnp.float32)
    y3 = jax.block_until_ready(layer_scale(x3, g3, min_pallas_bytes=0))
    assert jnp.allclose(y3, x3 * g3, atol=0, rtol=0)

    # 4) Awkward shape: D % 128 != 0 and M not divisible by the exact fold factor
    #    (exercises the copy-free partial-fold fallback), bf16 input.
    x4 = jax.random.normal(jax.random.PRNGKey(0), (3, 7, 96), dtype=jnp.bfloat16)
    g4 = 1e-5 * jnp.ones((96,), dtype=jnp.float32)
    y4 = jax.block_until_ready(layer_scale(x4, g4, min_pallas_bytes=0))
    ref4 = x4 * g4.astype(jnp.bfloat16)
    assert y4.shape == x4.shape and y4.dtype == jnp.bfloat16
    assert jnp.allclose(y4.astype(jnp.float32), ref4.astype(jnp.float32))

    print("KERNEL_OK")
</pallas_src>

<mosaic_0001>
module attributes {stable_mosaic.version = 11 : i64} {
  func.func @_layer_scale_kernel(%arg0: i32, %arg1: i32, %arg2: memref<1x512xf32, #tpu.memory_space<vmem>>, %arg3: memref<1x512xf32, #tpu.memory_space<vmem>>, %arg4: memref<1x512xf32, #tpu.memory_space<vmem>>) attributes {dimension_semantics = [#tpu.dimension_semantics<parallel>, #tpu.dimension_semantics<parallel>], iteration_bounds = array<i64: 1, 1>, scalar_prefetch = 0 : i64, scratch_operands = 0 : i64, tpu.core_type = #tpu.core_type<tc>, window_params = [{transform_indices = @transform_0, window_bounds = array<i64: 1, 512>}, {transform_indices = @transform_1, window_bounds = array<i64: 1, 512>}, {transform_indices = @transform_2, window_bounds = array<i64: 1, 512>}]} {
    %c0 = arith.constant 0 : index
    %c0_0 = arith.constant 0 : index
    %0 = vector.load %arg2[%c0, %c0_0] : memref<1x512xf32, #tpu.memory_space<vmem>>, vector<1x512xf32>
    %c0_1 = arith.constant 0 : index
    %c0_2 = arith.constant 0 : index
    %1 = vector.load %arg3[%c0_1, %c0_2] : memref<1x512xf32, #tpu.memory_space<vmem>>, vector<1x512xf32>
    %2 = arith.mulf %0, %1 : vector<1x512xf32>
    %c0_3 = arith.constant 0 : index
    %c0_4 = arith.constant 0 : index
    %3 = vector.load %arg4[%c0_3, %c0_4] : memref<1x512xf32, #tpu.memory_space<vmem>>, vector<1x512xf32>
    tpu.vector_store %arg4[%c0_3, %c0_4], %2 {strides = array<i32>} : memref<1x512xf32, #tpu.memory_space<vmem>>, vector<1x512xf32>,
    return
  }
  func.func @transform_0(%arg0: i32, %arg1: i32) -> (i32, i32) {
    %c0_i32 = arith.constant 0 : i32
    return %arg0, %arg1 : i32, i32
  }
  func.func @transform_1(%arg0: i32, %arg1: i32) -> (i32, i32) {
    %c0_i32 = arith.constant 0 : i32
    %c0_i32_0 = arith.constant 0 : i32
    return %c0_i32, %arg1 : i32, i32
  }
  func.func @transform_2(%arg0: i32, %arg1: i32) -> (i32, i32) {
    %c0_i32 = arith.constant 0 : i32
    return %arg0, %arg1 : i32, i32
  }
}

</mosaic_0001>

<llo_original>
// kernel: tpu_custom_call.1
$region0: #{tpu_custom_call.1}
  #allocation0 [shape = 'u32[]', space=smem, size = 0x4, offset = 0x4, fixed_abs, tag = 'smem constant byte address 0x4 - core index']
  #allocation1 [shape = 'u32[144,128]{1,0:T(1,128)}', space=vmem, size = 0x12000, scoped, tag = 'internal scratch']
  %s0 = inlined_call_operand.hbm [shape: f32[1,512], index: 0, kind: input, shape index: {}]
  %s1 = inlined_call_operand.hbm [shape: f32[1,512], index: 1, kind: input, shape index: {}]
  %s2 = inlined_call_operand.hbm [shape: f32[1,512], index: 2, kind: output, shape index: {}]
  %s3 = sld [smem:[#allocation0]]
  $region26: #{tpu_custom_call.1} parent=0
    _
  %s5 = ssub.s32 1, %s3
  %s6 = scalar_select 0, %s5, %s3
  $region1: #{tpu_custom_call.1} parent=0
    #allocation2 [shape = 'u8[2048]{0}', space=vmem, size = 0x800, scoped, tag = 'input window, operand 0, single buffered']
    #allocation3 [shape = 's32[1]{0}', space=sflag, size = 0x4, scoped, tag = 'scoped memory for tpu_custom_call.1']
    #allocation4 [shape = 's32[1]{0}', space=sflag, size = 0x4, scoped, tag = 'scoped memory for tpu_custom_call.1']
    #allocation5 [shape = 'u8[2048]{0}', space=vmem, size = 0x800, scoped, tag = 'input window, operand 1, single buffered']
    #allocation6 [shape = 's32[1]{0}', space=sflag, size = 0x4, scoped, tag = 'scoped memory for tpu_custom_call.1']
    #allocation7 [shape = 'u8[2048]{0}', space=vmem, size = 0x800, scoped, tag = 'output window, operand 0, single buffered']
    %7 = vsyncpa [#allocation3], 0
    %8 = vsyncpa [#allocation6], 0
    %9 = vsyncpa [#allocation4], 0
    // Predicated region
    $region2: #{tpu_custom_call.1} parent=1 // pred_check
      _
    $region3: #{tpu_custom_call.1} parent=1 // pred_check_branch
      %11 = sbr.rel (0) target = $region5
    $region4: #{tpu_custom_call.1} parent=1 // pred_region
      %s13 = ssub.s32 64, 64
      %14 = vsyncadd [#allocation3], %s13
      %s16 = sshll.u32 [#allocation2], 4
      %s17 = int_to_ptr.vmem [resolvable:$true] %s16
      %19 = dma.hbm_to_vmem [thread:$0]  %s0, 64, %s17, [#allocation3]
    $region5: #{tpu_custom_call.1} parent=1 // pred_fallthru
      _
    // Predicated region
    $region6: #{tpu_custom_call.1} parent=1 // pred_check
      _
    $region7: #{tpu_custom_call.1} parent=1 // pred_check_branch
      %21 = sbr.rel (0) target = $region9
    $region8: #{tpu_custom_call.1} parent=1 // pred_region
      %s23 = ssub.s32 64, 64
      %24 = vsyncadd [#allocation6], %s23
      %s26 = sshll.u32 [#allocation5], 4
      %s27 = int_to_ptr.vmem [resolvable:$true] %s26
      %29 = dma.hbm_to_vmem [thread:$0]  %s1, 64, %s27, [#allocation6]
    $region9: #{tpu_custom_call.1} parent=1 // pred_fallthru
      _
    // Predicated region
    $region10: #{tpu_custom_call.1} parent=1 // pred_check
      _
    $region11: #{tpu_custom_call.1} parent=1 // pred_check_branch
      %31 = sbr.rel (0) target = $region13
    $region12: #{tpu_custom_call.1} parent=1 // pred_region
      %32 = dma.done [#allocation3], 64
    $region13: #{tpu_custom_call.1} parent=1 // pred_fallthru
      _
    // Predicated region
    $region14: #{tpu_custom_call.1} parent=1 // pred_check
      _
    $region15: #{tpu_custom_call.1} parent=1 // pred_check_branch
      %34 = sbr.rel (0) target = $region17
    $region16: #{tpu_custom_call.1} parent=1 // pred_region
      %35 = dma.done [#allocation6], 64
    $region17: #{tpu_custom_call.1} parent=1 // pred_fallthru
      _
    %v36 = vld [vmem:[#allocation2] sm:$0xf]
    %v37 = vld [vmem:[#allocation5] sm:$0xf]
    %v38 = vmul.f32 %v36, %v37
    %v39 = vlaneseq
    %vm40 = vcmp.ge.s32.totalorder %v39, 0
    %vm41 = vcmp.lt.s32.totalorder %v39, 512
    %vm42 = vmand %vm40, %vm41
    %43 = vst.msk [vmem:[#allocation7] sm:$0xf] %vm42, %v38
    // Predicated region
    $region18: #{tpu_custom_call.1} parent=1 // pred_check
      _
    $region19: #{tpu_custom_call.1} parent=1 // pred_check_branch
      %45 = sbr.rel (0) target = $region21
    $region20: #{tpu_custom_call.1} parent=1 // pred_region
      %s47 = ssub.s32 64, 64
      %48 = vsyncadd [#allocation4], %s47
      %s50 = sshll.u32 [#allocation7], 4
      %s51 = int_to_ptr.vmem [resolvable:$true] %s50
      %53 = dma.vmem_to_hbm [thread:$0]  %s51, 64, %s2, [#allocation4]
    $region21: #{tpu_custom_call.1} parent=1 // pred_fallthru
      _
    // Predicated region
    $region22: #{tpu_custom_call.1} parent=1 // pred_check
      _
    $region23: #{tpu_custom_call.1} parent=1 // pred_check_branch
      %55 = sbr.rel (0) target = $region25
    $region24: #{tpu_custom_call.1} parent=1 // pred_region
      %56 = dma.done [#allocation4], 64
    $region25: #{tpu_custom_call.1} parent=1 // pred_fallthru
      _
    %57 = vsyncpa [#allocation3], 1
    %58 = vsyncpa [#allocation6], 1
    %59 = vsyncpa [#allocation4], 1

</llo_original>
